<compile_context>
chip_gen: v7x
topology: tpu7x:2x2x1
jax: 0.10.0
libtpu: 0.0.40
codegen_flags: <defaults>
</compile_context>

<pallas_src>
import functools

import jax
import jax.numpy as jnp
from jax.experimental import pallas as pl
from jax.experimental.pallas import tpu as pltpu


def _round_up(n, m):
    return ((n + m - 1) // m) * m


def _mlp_kernel(x_ref, w1_ref, b1_ref, w2_ref, b2_ref, w3_ref, b3_ref, o_ref):
    # fc1 + ReLU: bf16 MXU inputs, f32 accumulation, f32 bias/ReLU on the VPU.
    x = x_ref[...].astype(jnp.bfloat16)
    h1 = jnp.dot(x, w1_ref[...], preferred_element_type=jnp.float32)
    h1 = jnp.maximum(h1 + b1_ref[...], 0.0)
    # fc2 + ReLU
    h2 = jnp.dot(h1.astype(jnp.bfloat16), w2_ref[...],
                 preferred_element_type=jnp.float32)
    h2 = jnp.maximum(h2 + b2_ref[...], 0.0)
    # fc3 (lane-padded logits, no activation)
    out = jnp.dot(h2.astype(jnp.bfloat16), w3_ref[...],
                  preferred_element_type=jnp.float32)
    o_ref[...] = (out + b3_ref[...]).astype(o_ref.dtype)


@functools.partial(jax.jit, static_argnames=("block_b",))
def custom_classifier_forward(x, w1, b1, w2, b2, w3, b3, *, block_b=256):
    """x: (B, in_features) f32; weights (in, out) f32; biases (1, out) f32.

    Returns (B, num_classes) f32 logits.  Weights are cast to bf16 for the
    kernel; accumulation / bias / ReLU happen in f32.
    """
    B, F = x.shape
    num_classes = w3.shape[1]

    # --- lane-pad the final layer to a full 128-lane output slab -------------
    n_pad = _round_up(max(num_classes, 128), 128)
    w3p = jnp.zeros((w3.shape[0], n_pad), jnp.float32).at[:, :num_classes].set(w3)
    b3p = jnp.zeros((1, n_pad), jnp.float32).at[:, :num_classes].set(b3)

    # --- bf16 weight shipment (halves weight DMA; biases stay f32) -----------
    w1b = w1.astype(jnp.bfloat16)
    w2b = w2.astype(jnp.bfloat16)
    w3b = w3p.astype(jnp.bfloat16)

    # --- batch tiling: multiple of 8 sublanes, capped at block_b --------------
    tb = min(block_b, _round_up(B, 8))
    b_pad = _round_up(B, tb)
    if b_pad != B:
        x = jnp.pad(x, ((0, b_pad - B), (0, 0)))
    grid = (b_pad // tb,)

    h1_dim = w1.shape[1]
    h2_dim = w2.shape[1]

    out = pl.pallas_call(
        _mlp_kernel,
        out_shape=jax.ShapeDtypeStruct((b_pad, n_pad), jnp.float32),
        grid=grid,
        in_specs=[
            # activation tile follows the batch grid (double-buffered)
            pl.BlockSpec((tb, F), lambda i: (i, 0)),
            # weights/biases: constant block index -> resident in VMEM
            pl.BlockSpec((F, h1_dim), lambda i: (0, 0)),
            pl.BlockSpec((1, h1_dim), lambda i: (0, 0)),
            pl.BlockSpec((h1_dim, h2_dim), lambda i: (0, 0)),
            pl.BlockSpec((1, h2_dim), lambda i: (0, 0)),
            pl.BlockSpec((h2_dim, n_pad), lambda i: (0, 0)),
            pl.BlockSpec((1, n_pad), lambda i: (0, 0)),
        ],
        out_specs=pl.BlockSpec((tb, n_pad), lambda i: (i, 0)),
        compiler_params=pltpu.CompilerParams(
            dimension_semantics=("parallel",),
        ),
    )(x, w1b, b1, w2b, b2, w3b, b3p)

    return out[:B, :num_classes]


def init_linear_params(key, fan_in, fan_out):
    """Deterministic init matching nn.Linear's U(-1/sqrt(fan_in), 1/sqrt(fan_in)).

    Weight stored as (fan_in, fan_out) (transposed vs. PyTorch's (out, in)).
    Bias stored as (1, fan_out) so it broadcasts cleanly in the kernel.
    """
    kw, kb = jax.random.split(key)
    bound = 1.0 / (fan_in ** 0.5)
    w = jax.random.uniform(kw, (fan_in, fan_out), jnp.float32, -bound, bound)
    b = jax.random.uniform(kb, (1, fan_out), jnp.float32, -bound, bound)
    return w, b


if __name__ == "__main__":
    # model.fc.in_features in the reference script comes from a CNN backbone
    # (e.g. resnet18 -> 512). Use in_features=512, small batch.
    batch = 8
    in_features = 512
    num_classes = 3

    root = jax.random.PRNGKey(0)
    kx, k1, k2, k3 = jax.random.split(root, 4)

    x = jax.random.normal(kx, (batch, in_features), jnp.float32)
    w1, b1 = init_linear_params(k1, in_features, 512)
    w2, b2 = init_linear_params(k2, 512, 256)
    w3, b3 = init_linear_params(k3, 256, num_classes)

    out = custom_classifier_forward(x, w1, b1, w2, b2, w3, b3)
    out = jax.block_until_ready(out)
    assert out.shape == (batch, num_classes)

    # Reference 1: identical bf16-at-MXU-boundary math (tight tolerance).
    xb = x.astype(jnp.bfloat16)
    w1r, w2r = w1.astype(jnp.bfloat16), w2.astype(jnp.bfloat16)
    w3r = w3.astype(jnp.bfloat16)
    h = jnp.maximum(jnp.dot(xb, w1r, preferred_element_type=jnp.float32) + b1, 0.0)
    h = jnp.maximum(jnp.dot(h.astype(jnp.bfloat16), w2r,
                            preferred_element_type=jnp.float32) + b2, 0.0)
    ref_bf16 = jnp.dot(h.astype(jnp.bfloat16), w3r,
                       preferred_element_type=jnp.float32) + b3
    assert jnp.allclose(out, ref_bf16, atol=1e-3, rtol=1e-3), "mismatch vs bf16 reference"

    # Reference 2: full-f32 semantics of the original nn.Module (loose tolerance,
    # only bounded by bf16 weight/activation quantization).
    h32 = jnp.maximum(x @ w1 + b1, 0.0)
    h32 = jnp.maximum(h32 @ w2 + b2, 0.0)
    ref_f32 = h32 @ w3 + b3
    assert jnp.allclose(out, ref_f32, atol=1e-1, rtol=1e-1), "mismatch vs f32 reference"

    print("KERNEL_OK")
</pallas_src>

<mosaic_0001>
module attributes {stable_mosaic.version = 11 : i64} {
  func.func @_mlp_kernel(%arg0: i32, %arg1: memref<8x512xf32, #tpu.memory_space<vmem>>, %arg2: memref<512x512xbf16, #tpu.memory_space<vmem>>, %arg3: memref<1x512xf32, #tpu.memory_space<vmem>>, %arg4: memref<512x256xbf16, #tpu.memory_space<vmem>>, %arg5: memref<1x256xf32, #tpu.memory_space<vmem>>, %arg6: memref<256x128xbf16, #tpu.memory_space<vmem>>, %arg7: memref<1x128xf32, #tpu.memory_space<vmem>>, %arg8: memref<8x128xf32, #tpu.memory_space<vmem>>) attributes {dimension_semantics = [#tpu.dimension_semantics<parallel>], iteration_bounds = array<i64: 1>, scalar_prefetch = 0 : i64, scratch_operands = 0 : i64, tpu.core_type = #tpu.core_type<tc>, window_params = [{transform_indices = @transform_0, window_bounds = array<i64: 8, 512>}, {pipeline_mode = #tpu.pipeline_mode<synchronous>, transform_indices = @transform_1, window_bounds = array<i64: 512, 512>}, {pipeline_mode = #tpu.pipeline_mode<synchronous>, transform_indices = @transform_2, window_bounds = array<i64: 1, 512>}, {pipeline_mode = #tpu.pipeline_mode<synchronous>, transform_indices = @transform_3, window_bounds = array<i64: 512, 256>}, {pipeline_mode = #tpu.pipeline_mode<synchronous>, transform_indices = @transform_4, window_bounds = array<i64: 1, 256>}, {pipeline_mode = #tpu.pipeline_mode<synchronous>, transform_indices = @transform_5, window_bounds = array<i64: 256, 128>}, {pipeline_mode = #tpu.pipeline_mode<synchronous>, transform_indices = @transform_6, window_bounds = array<i64: 1, 128>}, {transform_indices = @transform_7, window_bounds = array<i64: 8, 128>}]} {
    %c0 = arith.constant 0 : index
    %c0_0 = arith.constant 0 : index
    %0 = vector.load %arg1[%c0, %c0_0] : memref<8x512xf32, #tpu.memory_space<vmem>>, vector<8x512xf32>
    %1 = arith.truncf %0 : vector<8x512xf32> to vector<8x512xbf16>
    %c0_1 = arith.constant 0 : index
    %c0_2 = arith.constant 0 : index
    %2 = vector.load %arg2[%c0_1, %c0_2] : memref<512x512xbf16, #tpu.memory_space<vmem>>, vector<512x512xbf16>
    %cst = arith.constant dense<0.000000e+00> : vector<8x512xf32>
    %3 = tpu.matmul %1, %2, %cst {dimension_numbers = #tpu.dot_dimension_numbers<[1], [0], [0], [1], [0, 0, 1, 1], [], []>} : vector<8x512xbf16>, vector<512x512xbf16>, vector<8x512xf32> -> vector<8x512xf32>
    %c0_3 = arith.constant 0 : index
    %c0_4 = arith.constant 0 : index
    %4 = vector.load %arg3[%c0_3, %c0_4] : memref<1x512xf32, #tpu.memory_space<vmem>>, vector<1x512xf32>
    %5 = vector.broadcast %4 : vector<1x512xf32> to vector<8x512xf32>
    %6 = arith.addf %3, %5 : vector<8x512xf32>
    %cst_5 = arith.constant 0.000000e+00 : f32
    %7 = vector.broadcast %cst_5 : f32 to vector<8x512xf32>
    %8 = arith.maximumf %6, %7 : vector<8x512xf32>
    %9 = arith.truncf %8 : vector<8x512xf32> to vector<8x512xbf16>
    %c0_6 = arith.constant 0 : index
    %c0_7 = arith.constant 0 : index
    %10 = vector.load %arg4[%c0_6, %c0_7] : memref<512x256xbf16, #tpu.memory_space<vmem>>, vector<512x256xbf16>
    %cst_8 = arith.constant dense<0.000000e+00> : vector<8x256xf32>
    %11 = tpu.matmul %9, %10, %cst_8 {dimension_numbers = #tpu.dot_dimension_numbers<[1], [0], [0], [1], [0, 0, 1, 1], [], []>} : vector<8x512xbf16>, vector<512x256xbf16>, vector<8x256xf32> -> vector<8x256xf32>
    %c0_9 = arith.constant 0 : index
    %c0_10 = arith.constant 0 : index
    %12 = vector.load %arg5[%c0_9, %c0_10] : memref<1x256xf32, #tpu.memory_space<vmem>>, vector<1x256xf32>
    %13 = vector.broadcast %12 : vector<1x256xf32> to vector<8x256xf32>
    %14 = arith.addf %11, %13 : vector<8x256xf32>
    %cst_11 = arith.constant 0.000000e+00 : f32
    %15 = vector.broadcast %cst_11 : f32 to vector<8x256xf32>
    %16 = arith.maximumf %14, %15 : vector<8x256xf32>
    %17 = arith.truncf %16 : vector<8x256xf32> to vector<8x256xbf16>
    %c0_12 = arith.constant 0 : index
    %c0_13 = arith.constant 0 : index
    %18 = vector.load %arg6[%c0_12, %c0_13] : memref<256x128xbf16, #tpu.memory_space<vmem>>, vector<256x128xbf16>
    %cst_14 = arith.constant dense<0.000000e+00> : vector<8x128xf32>
    %19 = tpu.matmul %17, %18, %cst_14 {dimension_numbers = #tpu.dot_dimension_numbers<[1], [0], [0], [1], [0, 0, 1, 1], [], []>} : vector<8x256xbf16>, vector<256x128xbf16>, vector<8x128xf32> -> vector<8x128xf32>
    %c0_15 = arith.constant 0 : index
    %c0_16 = arith.constant 0 : index
    %20 = vector.load %arg7[%c0_15, %c0_16] : memref<1x128xf32, #tpu.memory_space<vmem>>, vector<1x128xf32>
    %21 = vector.broadcast %20 : vector<1x128xf32> to vector<8x128xf32>
    %22 = arith.addf %19, %21 : vector<8x128xf32>
    %c0_17 = arith.constant 0 : index
    %c0_18 = arith.constant 0 : index
    %23 = vector.load %arg8[%c0_17, %c0_18] : memref<8x128xf32, #tpu.memory_space<vmem>>, vector<8x128xf32>
    tpu.vector_store %arg8[%c0_17, %c0_18], %22 {strides = array<i32>} : memref<8x128xf32, #tpu.memory_space<vmem>>, vector<8x128xf32>,
    return
  }
  func.func @transform_0(%arg0: i32) -> (i32, i32) {
    %c0_i32 = arith.constant 0 : i32
    %c0_i32_0 = arith.constant 0 : i32
    return %arg0, %c0_i32 : i32, i32
  }
  func.func @transform_1(%arg0: i32) -> (i32, i32) {
    %c0_i32 = arith.constant 0 : i32
    %c0_i32_0 = arith.constant 0 : i32
    %c0_i32_1 = arith.constant 0 : i32
    return %c0_i32, %c0_i32_0 : i32, i32
  }
  func.func @transform_2(%arg0: i32) -> (i32, i32) {
    %c0_i32 = arith.constant 0 : i32
    %c0_i32_0 = arith.constant 0 : i32
    %c0_i32_1 = arith.constant 0 : i32
    return %c0_i32, %c0_i32_0 : i32, i32
  }
  func.func @transform_3(%arg0: i32) -> (i32, i32) {
    %c0_i32 = arith.constant 0 : i32
    %c0_i32_0 = arith.constant 0 : i32
    %c0_i32_1 = arith.constant 0 : i32
    return %c0_i32, %c0_i32_0 : i32, i32
  }
  func.func @transform_4(%arg0: i32) -> (i32, i32) {
    %c0_i32 = arith.constant 0 : i32
    %c0_i32_0 = arith.constant 0 : i32
    %c0_i32_1 = arith.constant 0 : i32
    return %c0_i32, %c0_i32_0 : i32, i32
  }
  func.func @transform_5(%arg0: i32) -> (i32, i32) {
    %c0_i32 = arith.constant 0 : i32
    %c0_i32_0 = arith.constant 0 : i32
    %c0_i32_1 = arith.constant 0 : i32
    return %c0_i32, %c0_i32_0 : i32, i32
  }
  func.func @transform_6(%arg0: i32) -> (i32, i32) {
    %c0_i32 = arith.constant 0 : i32
    %c0_i32_0 = arith.constant 0 : i32
    %c0_i32_1 = arith.constant 0 : i32
    return %c0_i32, %c0_i32_0 : i32, i32
  }
  func.func @transform_7(%arg0: i32) -> (i32, i32) {
    %c0_i32 = arith.constant 0 : i32
    %c0_i32_0 = arith.constant 0 : i32
    return %arg0, %c0_i32 : i32, i32
  }
}

</mosaic_0001>

<llo_original>
// kernel: custom_classifier_forward.1
$region0: #{custom_classifier_forward.1}
  #allocation0 [shape = 'u32[]', space=smem, size = 0x4, offset = 0x4, fixed_abs, tag = 'smem constant byte address 0x4 - core index']
  #allocation1 [shape = 'u32[144,128]{1,0:T(1,128)}', space=vmem, size = 0x12000, scoped, tag = 'internal scratch']
  %s0 = inlined_call_operand.vmem [shape: f32[8,512], index: 0, kind: input, shape index: {}]
  %s1 = inlined_call_operand.vmem [shape: bf16[512,512], index: 1, kind: input, shape index: {}]
  %s2 = inlined_call_operand.vmem [shape: f32[1,512], index: 2, kind: input, shape index: {}]
  %s3 = inlined_call_operand.vmem [shape: bf16[512,256], index: 3, kind: input, shape index: {}]
  %s4 = inlined_call_operand.vmem [shape: f32[1,256], index: 4, kind: input, shape index: {}]
  %s5 = inlined_call_operand.vmem [shape: bf16[256,128], index: 5, kind: input, shape index: {}]
  %s6 = inlined_call_operand.vmem [shape: f32[1,128], index: 6, kind: input, shape index: {}]
  %s7 = inlined_call_operand.vmem [shape: f32[8,128], index: 7, kind: output, shape index: {}]
  %s8 = sld [smem:[#allocation0]]
  $region38: #{custom_classifier_forward.1} parent=0
    _
  %s10 = ssub.s32 1, %s8
  %s11 = scalar_select 0, %s10, %s8
  // Predicated region
  $region2: #{custom_classifier_forward.1} parent=0 // pred_check
    _
  $region3: #{custom_classifier_forward.1} parent=0 // pred_check_branch
    %13 = sbr.rel (0) target = $region5
  $region4: #{custom_classifier_forward.1} parent=0 // pred_region
    _
  $region5: #{custom_classifier_forward.1} parent=0 // pred_fallthru
    _
  // Predicated region
  $region6: #{custom_classifier_forward.1} parent=0 // pred_check
    _
  $region7: #{custom_classifier_forward.1} parent=0 // pred_check_branch
    %15 = sbr.rel (0) target = $region9
  $region8: #{custom_classifier_forward.1} parent=0 // pred_region
    _
  $region9: #{custom_classifier_forward.1} parent=0 // pred_fallthru
    _
  // Predicated region
  $region10: #{custom_classifier_forward.1} parent=0 // pred_check
    _
  $region11: #{custom_classifier_forward.1} parent=0 // pred_check_branch
    %17 = sbr.rel (0) target = $region13
  $region12: #{custom_classifier_forward.1} parent=0 // pred_region
    _
  $region13: #{custom_classifier_forward.1} parent=0 // pred_fallthru
    _
  // Predicated region
  $region14: #{custom_classifier_forward.1} parent=0 // pred_check
    _
  $region15: #{custom_classifier_forward.1} parent=0 // pred_check_branch
    %19 = sbr.rel (0) target = $region17
  $region16: #{custom_classifier_forward.1} parent=0 // pred_region
    _
  $region17: #{custom_classifier_forward.1} parent=0 // pred_fallthru
    _
  // Predicated region
  $region18: #{custom_classifier_forward.1} parent=0 // pred_check
    _
  $region19: #{custom_classifier_forward.1} parent=0 // pred_check_branch
    %21 = sbr.rel (0) target = $region21
  $region20: #{custom_classifier_forward.1} parent=0 // pred_region
    _
  $region21: #{custom_classifier_forward.1} parent=0 // pred_fallthru
    _
  // Predicated region
  $region22: #{custom_classifier_forward.1} parent=0 // pred_check
    _
  $region23: #{custom_classifier_forward.1} parent=0 // pred_check_branch
    %23 = sbr.rel (0) target = $region25
  $region24: #{custom_classifier_forward.1} parent=0 // pred_region
    _
  $region25: #{custom_classifier_forward.1} parent=0 // pred_fallthru
    _
  // Predicated region
  $region26: #{custom_classifier_forward.1} parent=0 // pred_check
    _
  $region27: #{custom_classifier_forward.1} parent=0 // pred_check_branch
    %25 = sbr.rel (0) target = $region29
  $region28: #{custom_classifier_forward.1} parent=0 // pred_region
    _
  $region29: #{custom_classifier_forward.1} parent=0 // pred_fallthru
    _
  %v27 = vld [vmem:[%s0] sm:$0xff]
  %v28 = vld [vmem:[%s0 + $0x8] sm:$0xff]
  %v29 = vld [vmem:[%s0 + $0x10] sm:$0xff]
  %v30 = vld [vmem:[%s0 + $0x18] sm:$0xff]
  %v31 = vpack.c.bf16 %v27, %v27
  %v32 = vpack.c.bf16 %v28, %v28
  %v33 = vpack.c.bf16 %v29, %v29
  %v34 = vpack.c.bf16 %v30, %v30
  %v35 = vld [vmem:[%s1] sm:$0xff]
  %v36 = vld [vmem:[%s1 + $0x8] sm:$0xff]
  %v37 = vld [vmem:[%s1 + $0x10] sm:$0xff]
  %v38 = vld [vmem:[%s1 + $0x18] sm:$0xff]
  %v39 = vld [vmem:[%s1 + $0x20] sm:$0xff]
  %v40 = vld [vmem:[%s1 + $0x28] sm:$0xff]
  %v41 = vld [vmem:[%s1 + $0x30] sm:$0xff]
  %v42 = vld [vmem:[%s1 + $0x38] sm:$0xff]
  %v43 = vld [vmem:[%s1 + $0x40] sm:$0xff]
  %v44 = vld [vmem:[%s1 + $0x48] sm:$0xff]
  %v45 = vld [vmem:[%s1 + $0x50] sm:$0xff]
  %v46 = vld [vmem:[%s1 + $0x58] sm:$0xff]
  %v47 = vld [vmem:[%s1 + $0x60] sm:$0xff]
  %v48 = vld [vmem:[%s1 + $0x68] sm:$0xff]
  %v49 = vld [vmem:[%s1 + $0x70] sm:$0xff]
  %v50 = vld [vmem:[%s1 + $0x78] sm:$0xff]
  %v51 = vld [vmem:[%s1 + $0x80] sm:$0xff]
  %v52 = vld [vmem:[%s1 + $0x88] sm:$0xff]
  %v53 = vld [vmem:[%s1 + $0x90] sm:$0xff]
  %v54 = vld [vmem:[%s1 + $0x98] sm:$0xff]
  %v55 = vld [vmem:[%s1 + $0xa0] sm:$0xff]
  %v56 = vld [vmem:[%s1 + $0xa8] sm:$0xff]
  %v57 = vld [vmem:[%s1 + $0xb0] sm:$0xff]
  %v58 = vld [vmem:[%s1 + $0xb8] sm:$0xff]
  %v59 = vld [vmem:[%s1 + $0xc0] sm:$0xff]
  %v60 = vld [vmem:[%s1 + $0xc8] sm:$0xff]
  %v61 = vld [vmem:[%s1 + $0xd0] sm:$0xff]
  %v62 = vld [vmem:[%s1 + $0xd8] sm:$0xff]
  %v63 = vld [vmem:[%s1 + $0xe0] sm:$0xff]
  %v64 = vld [vmem:[%s1 + $0xe8] sm:$0xff]
  %v65 = vld [vmem:[%s1 + $0xf0] sm:$0xff]
  %v66 = vld [vmem:[%s1 + $0xf8] sm:$0xff]
  %v67 = vld [vmem:[%s1 + $0x100] sm:$0xff]
  %v68 = vld [vmem:[%s1 + $0x108] sm:$0xff]
  %v69 = vld [vmem:[%s1 + $0x110] sm:$0xff]
  %v70 = vld [vmem:[%s1 + $0x118] sm:$0xff]
  %v71 = vld [vmem:[%s1 + $0x120] sm:$0xff]
  %v72 = vld [vmem:[%s1 + $0x128] sm:$0xff]
  %v73 = vld [vmem:[%s1 + $0x130] sm:$0xff]
  %v74 = vld [vmem:[%s1 + $0x138] sm:$0xff]
  %v75 = vld [vmem:[%s1 + $0x140] sm:$0xff]
  %v76 = vld [vmem:[%s1 + $0x148] sm:$0xff]
  %v77 = vld [vmem:[%s1 + $0x150] sm:$0xff]
  %v78 = vld [vmem:[%s1 + $0x158] sm:$0xff]
  %v79 = vld [vmem:[%s1 + $0x160] sm:$0xff]
  %v80 = vld [vmem:[%s1 + $0x168] sm:$0xff]
  %v81 = vld [vmem:[%s1 + $0x170] sm:$0xff]
  %v82 = vld [vmem:[%s1 + $0x178] sm:$0xff]
  %v83 = vld [vmem:[%s1 + $0x180] sm:$0xff]
  %v84 = vld [vmem:[%s1 + $0x188] sm:$0xff]
  %v85 = vld [vmem:[%s1 + $0x190] sm:$0xff]
  %v86 = vld [vmem:[%s1 + $0x198] sm:$0xff]
  %v87 = vld [vmem:[%s1 + $0x1a0] sm:$0xff]
  %v88 = vld [vmem:[%s1 + $0x1a8] sm:$0xff]
  %v89 = vld [vmem:[%s1 + $0x1b0] sm:$0xff]
  %v90 = vld [vmem:[%s1 + $0x1b8] sm:$0xff]
  %v91 = vld [vmem:[%s1 + $0x1c0] sm:$0xff]
  %v92 = vld [vmem:[%s1 + $0x1c8] sm:$0xff]
  %v93 = vld [vmem:[%s1 + $0x1d0] sm:$0xff]
  %v94 = vld [vmem:[%s1 + $0x1d8] sm:$0xff]
  %v95 = vld [vmem:[%s1 + $0x1e0] sm:$0xff]
  %v96 = vld [vmem:[%s1 + $0x1e8] sm:$0xff]
  %v97 = vld [vmem:[%s1 + $0x1f0] sm:$0xff]
  %v98 = vld [vmem:[%s1 + $0x1f8] sm:$0xff]
  %v99 = vld [vmem:[%s1 + $0x200] sm:$0xff]
  %v100 = vld [vmem:[%s1 + $0x208] sm:$0xff]
  %v101 = vld [vmem:[%s1 + $0x210] sm:$0xff]
  %v102 = vld [vmem:[%s1 + $0x218] sm:$0xff]
  %v103 = vld [vmem:[%s1 + $0x220] sm:$0xff]
  %v104 = vld [vmem:[%s1 + $0x228] sm:$0xff]
  %v105 = vld [vmem:[%s1 + $0x230] sm:$0xff]
  %v106 = vld [vmem:[%s1 + $0x238] sm:$0xff]
  %v107 = vld [vmem:[%s1 + $0x240] sm:$0xff]
  %v108 = vld [vmem:[%s1 + $0x248] sm:$0xff]
  %v109 = vld [vmem:[%s1 + $0x250] sm:$0xff]
  %v110 = vld [vmem:[%s1 + $0x258] sm:$0xff]
  %v111 = vld [vmem:[%s1 + $0x260] sm:$0xff]
  %v112 = vld [vmem:[%s1 + $0x268] sm:$0xff]
  %v113 = vld [vmem:[%s1 + $0x270] sm:$0xff]
  %v114 = vld [vmem:[%s1 + $0x278] sm:$0xff]
  %v115 = vld [vmem:[%s1 + $0x280] sm:$0xff]
  %v116 = vld [vmem:[%s1 + $0x288] sm:$0xff]
  %v117 = vld [vmem:[%s1 + $0x290] sm:$0xff]
  %v118 = vld [vmem:[%s1 + $0x298] sm:$0xff]
  %v119 = vld [vmem:[%s1 + $0x2a0] sm:$0xff]
  %v120 = vld [vmem:[%s1 + $0x2a8] sm:$0xff]
  %v121 = vld [vmem:[%s1 + $0x2b0] sm:$0xff]
  %v122 = vld [vmem:[%s1 + $0x2b8] sm:$0xff]
  %v123 = vld [vmem:[%s1 + $0x2c0] sm:$0xff]
  %v124 = vld [vmem:[%s1 + $0x2c8] sm:$0xff]
  %v125 = vld [vmem:[%s1 + $0x2d0] sm:$0xff]
  %v126 = vld [vmem:[%s1 + $0x2d8] sm:$0xff]
  %v127 = vld [vmem:[%s1 + $0x2e0] sm:$0xff]
  %v128 = vld [vmem:[%s1 + $0x2e8] sm:$0xff]
  %v129 = vld [vmem:[%s1 + $0x2f0] sm:$0xff]
  %v130 = vld [vmem:[%s1 + $0x2f8] sm:$0xff]
  %v131 = vld [vmem:[%s1 + $0x300] sm:$0xff]
  %v132 = vld [vmem:[%s1 + $0x308] sm:$0xff]
  %v133 = vld [vmem:[%s1 + $0x310] sm:$0xff]
  %v134 = vld [vmem:[%s1 + $0x318] sm:$0xff]
  %v135 = vld [vmem:[%s1 + $0x320] sm:$0xff]
  %v136 = vld [vmem:[%s1 + $0x328] sm:$0xff]
  %v137 = vld [vmem:[%s1 + $0x330] sm:$0xff]
  %v138 = vld [vmem:[%s1 + $0x338] sm:$0xff]
  %v139 = vld [vmem:[%s1 + $0x340] sm:$0xff]
  %v140 = vld [vmem:[%s1 + $0x348] sm:$0xff]
  %v141 = vld [vmem:[%s1 + $0x350] sm:$0xff]
  %v142 = vld [vmem:[%s1 + $0x358] sm:$0xff]
  %v143 = vld [vmem:[%s1 + $0x360] sm:$0xff]
  %v144 = vld [vmem:[%s1 + $0x368] sm:$0xff]
  %v145 = vld [vmem:[%s1 + $0x370] sm:$0xff]
  %v146 = vld [vmem:[%s1 + $0x378] sm:$0xff]
  %v147 = vld [vmem:[%s1 + $0x380] sm:$0xff]
  %v148 = vld [vmem:[%s1 + $0x388] sm:$0xff]
  %v149 = vld [vmem:[%s1 + $0x390] sm:$0xff]
  %v150 = vld [vmem:[%s1 + $0x398] sm:$0xff]
  %v151 = vld [vmem:[%s1 + $0x3a0] sm:$0xff]
  %v152 = vld [vmem:[%s1 + $0x3a8] sm:$0xff]
  %v153 = vld [vmem:[%s1 + $0x3b0] sm:$0xff]
  %v154 = vld [vmem:[%s1 + $0x3b8] sm:$0xff]
  %v155 = vld [vmem:[%s1 + $0x3c0] sm:$0xff]
  %v156 = vld [vmem:[%s1 + $0x3c8] sm:$0xff]
  %v157 = vld [vmem:[%s1 + $0x3d0] sm:$0xff]
  %v158 = vld [vmem:[%s1 + $0x3d8] sm:$0xff]
  %v159 = vld [vmem:[%s1 + $0x3e0] sm:$0xff]
  %v160 = vld [vmem:[%s1 + $0x3e8] sm:$0xff]
  %v161 = vld [vmem:[%s1 + $0x3f0] sm:$0xff]
  %v162 = vld [vmem:[%s1 + $0x3f8] sm:$0xff]
  %v163 = vld [vmem:[%s2] sm:$0xf]
  %v165 = vlaneseq
  %v166 = vshrl.u32 %v165, 7
  %v167 = vsub.s32 0, %v166
  %v168 = vrot.slane %v163, %v167
  %v169 = vlaneseq
  %v170 = vshrl.u32 %v169, 7
  %v171 = vsub.s32 1, %v170
  %v172 = vrot.slane %v163, %v171
  %v173 = vlaneseq
  %v174 = vshrl.u32 %v173, 7
  %v175 = vsub.s32 2, %v174
  %v176 = vrot.slane %v163, %v175
  %v177 = vlaneseq
  %v178 = vshrl.u32 %v177, 7
  %v179 = vsub.s32 3, %v178
  %v180 = vrot.slane %v163, %v179
  %v313 = vunpack.c.l.b16 %v35
  %v314 = vunpack.c.h.b16 %v35
  %v315 = vunpack.c.l.b16 %v36
  %v316 = vunpack.c.h.b16 %v36
  %v317 = vunpack.c.l.b16 %v37
  %v318 = vunpack.c.h.b16 %v37
  %v319 = vunpack.c.l.b16 %v38
  %v320 = vunpack.c.h.b16 %v38
  %v321 = vunpack.c.l.b16 %v39
  %v322 = vunpack.c.h.b16 %v39
  %v323 = vunpack.c.l.b16 %v40
  %v324 = vunpack.c.h.b16 %v40
  %v325 = vunpack.c.l.b16 %v41
  %v326 = vunpack.c.h.b16 %v41
  %v327 = vunpack.c.l.b16 %v42
  %v328 = vunpack.c.h.b16 %v42
  %v329 = vunpack.c.l.b16 %v43
  %v330 = vunpack.c.h.b16 %v43
  %v331 = vunpack.c.l.b16 %v44
  %v332 = vunpack.c.h.b16 %v44
  %v333 = vunpack.c.l.b16 %v45
  %v334 = vunpack.c.h.b16 %v45
  %v335 = vunpack.c.l.b16 %v46
  %v336 = vunpack.c.h.b16 %v46
  %v337 = vunpack.c.l.b16 %v47
  %v338 = vunpack.c.h.b16 %v47
  %v339 = vunpack.c.l.b16 %v48
  %v340 = vunpack.c.h.b16 %v48
  %v341 = vunpack.c.l.b16 %v49
  %v342 = vunpack.c.h.b16 %v49
  %v343 = vunpack.c.l.b16 %v50
  %v344 = vunpack.c.h.b16 %v50
  %v345 = vunpack.c.l.b16 %v51
  %v346 = vunpack.c.h.b16 %v51
  %v347 = vunpack.c.l.b16 %v52
  %v348 = vunpack.c.h.b16 %v52
  %v349 = vunpack.c.l.b16 %v53
  %v350 = vunpack.c.h.b16 %v53
  %v351 = vunpack.c.l.b16 %v54
  %v352 = vunpack.c.h.b16 %v54
  %v353 = vunpack.c.l.b16 %v55
  %v354 = vunpack.c.h.b16 %v55
  %v355 = vunpack.c.l.b16 %v56
  %v356 = vunpack.c.h.b16 %v56
  %v357 = vunpack.c.l.b16 %v57
  %v358 = vunpack.c.h.b16 %v57
  %v359 = vunpack.c.l.b16 %v58
  %v360 = vunpack.c.h.b16 %v58
  %v361 = vunpack.c.l.b16 %v59
  %v362 = vunpack.c.h.b16 %v59
  %v363 = vunpack.c.l.b16 %v60
  %v364 = vunpack.c.h.b16 %v60
  %v365 = vunpack.c.l.b16 %v61
  %v366 = vunpack.c.h.b16 %v61
  %v367 = vunpack.c.l.b16 %v62
  %v368 = vunpack.c.h.b16 %v62
  %v369 = vunpack.c.l.b16 %v63
  %v370 = vunpack.c.h.b16 %v63
  %v371 = vunpack.c.l.b16 %v64
  %v372 = vunpack.c.h.b16 %v64
  %v373 = vunpack.c.l.b16 %v65
  %v374 = vunpack.c.h.b16 %v65
  %v375 = vunpack.c.l.b16 %v66
  %v376 = vunpack.c.h.b16 %v66
  %v377 = vunpack.c.l.b16 %v67
  %v378 = vunpack.c.h.b16 %v67
  %v379 = vunpack.c.l.b16 %v68
  %v380 = vunpack.c.h.b16 %v68
  %v381 = vunpack.c.l.b16 %v69
  %v382 = vunpack.c.h.b16 %v69
  %v383 = vunpack.c.l.b16 %v70
  %v384 = vunpack.c.h.b16 %v70
  %v385 = vunpack.c.l.b16 %v71
  %v386 = vunpack.c.h.b16 %v71
  %v387 = vunpack.c.l.b16 %v72
  %v388 = vunpack.c.h.b16 %v72
  %v389 = vunpack.c.l.b16 %v73
  %v390 = vunpack.c.h.b16 %v73
  %v391 = vunpack.c.l.b16 %v74
  %v392 = vunpack.c.h.b16 %v74
  %v393 = vunpack.c.l.b16 %v75
  %v394 = vunpack.c.h.b16 %v75
  %v395 = vunpack.c.l.b16 %v76
  %v396 = vunpack.c.h.b16 %v76
  %v397 = vunpack.c.l.b16 %v77
  %v398 = vunpack.c.h.b16 %v77
  %v399 = vunpack.c.l.b16 %v78
  %v400 = vunpack.c.h.b16 %v78
  %v401 = vunpack.c.l.b16 %v79
  %v402 = vunpack.c.h.b16 %v79
  %v403 = vunpack.c.l.b16 %v80
  %v404 = vunpack.c.h.b16 %v80
  %v405 = vunpack.c.l.b16 %v81
  %v406 = vunpack.c.h.b16 %v81
  %v407 = vunpack.c.l.b16 %v82
  %v408 = vunpack.c.h.b16 %v82
  %v409 = vunpack.c.l.b16 %v83
  %v410 = vunpack.c.h.b16 %v83
  %v411 = vunpack.c.l.b16 %v84
  %v412 = vunpack.c.h.b16 %v84
  %v413 = vunpack.c.l.b16 %v85
  %v414 = vunpack.c.h.b16 %v85
  %v415 = vunpack.c.l.b16 %v86
  %v416 = vunpack.c.h.b16 %v86
  %v417 = vunpack.c.l.b16 %v87
  %v418 = vunpack.c.h.b16 %v87
  %v419 = vunpack.c.l.b16 %v88
  %v420 = vunpack.c.h.b16 %v88
  %v421 = vunpack.c.l.b16 %v89
  %v422 = vunpack.c.h.b16 %v89
  %v423 = vunpack.c.l.b16 %v90
  %v424 = vunpack.c.h.b16 %v90
  %v425 = vunpack.c.l.b16 %v91
  %v426 = vunpack.c.h.b16 %v91
  %v427 = vunpack.c.l.b16 %v92
  %v428 = vunpack.c.h.b16 %v92
  %v429 = vunpack.c.l.b16 %v93
  %v430 = vunpack.c.h.b16 %v93
  %v431 = vunpack.c.l.b16 %v94
  %v432 = vunpack.c.h.b16 %v94
  %v433 = vunpack.c.l.b16 %v95
  %v434 = vunpack.c.h.b16 %v95
  %v435 = vunpack.c.l.b16 %v96
  %v436 = vunpack.c.h.b16 %v96
  %v437 = vunpack.c.l.b16 %v97
  %v438 = vunpack.c.h.b16 %v97
  %v439 = vunpack.c.l.b16 %v98
  %v440 = vunpack.c.h.b16 %v98
  %v441 = vunpack.c.l.b16 %v99
  %v442 = vunpack.c.h.b16 %v99
  %v443 = vunpack.c.l.b16 %v100
  %v444 = vunpack.c.h.b16 %v100
  %v445 = vunpack.c.l.b16 %v101
  %v446 = vunpack.c.h.b16 %v101
  %v447 = vunpack.c.l.b16 %v102
  %v448 = vunpack.c.h.b16 %v102
  %v449 = vunpack.c.l.b16 %v103
  %v450 = vunpack.c.h.b16 %v103
  %v451 = vunpack.c.l.b16 %v104
  %v452 = vunpack.c.h.b16 %v104
  %v453 = vunpack.c.l.b16 %v105
  %v454 = vunpack.c.h.b16 %v105
  %v455 = vunpack.c.l.b16 %v106
  %v456 = vunpack.c.h.b16 %v106
  %v457 = vunpack.c.l.b16 %v107
  %v458 = vunpack.c.h.b16 %v107
  %v459 = vunpack.c.l.b16 %v108
  %v460 = vunpack.c.h.b16 %v108
  %v461 = vunpack.c.l.b16 %v109
  %v462 = vunpack.c.h.b16 %v109
  %v463 = vunpack.c.l.b16 %v110
  %v464 = vunpack.c.h.b16 %v110
  %v465 = vunpack.c.l.b16 %v111
  %v466 = vunpack.c.h.b16 %v111
  %v467 = vunpack.c.l.b16 %v112
  %v468 = vunpack.c.h.b16 %v112
  %v469 = vunpack.c.l.b16 %v113
  %v470 = vunpack.c.h.b16 %v113
  %v471 = vunpack.c.l.b16 %v114
  %v472 = vunpack.c.h.b16 %v114
  %v473 = vunpack.c.l.b16 %v115
  %v474 = vunpack.c.h.b16 %v115
  %v475 = vunpack.c.l.b16 %v116
  %v476 = vunpack.c.h.b16 %v116
  %v477 = vunpack.c.l.b16 %v117
  %v478 = vunpack.c.h.b16 %v117
  %v479 = vunpack.c.l.b16 %v118
  %v480 = vunpack.c.h.b16 %v118
  %v481 = vunpack.c.l.b16 %v119
  %v482 = vunpack.c.h.b16 %v119
  %v483 = vunpack.c.l.b16 %v120
  %v484 = vunpack.c.h.b16 %v120
  %v485 = vunpack.c.l.b16 %v121
  %v486 = vunpack.c.h.b16 %v121
  %v487 = vunpack.c.l.b16 %v122
  %v488 = vunpack.c.h.b16 %v122
  %v489 = vunpack.c.l.b16 %v123
  %v490 = vunpack.c.h.b16 %v123
  %v491 = vunpack.c.l.b16 %v124
  %v492 = vunpack.c.h.b16 %v124
  %v493 = vunpack.c.l.b16 %v125
  %v494 = vunpack.c.h.b16 %v125
  %v495 = vunpack.c.l.b16 %v126
  %v496 = vunpack.c.h.b16 %v126
  %v497 = vunpack.c.l.b16 %v127
  %v498 = vunpack.c.h.b16 %v127
  %v499 = vunpack.c.l.b16 %v128
  %v500 = vunpack.c.h.b16 %v128
  %v501 = vunpack.c.l.b16 %v129
  %v502 = vunpack.c.h.b16 %v129
  %v503 = vunpack.c.l.b16 %v130
  %v504 = vunpack.c.h.b16 %v130
  %v505 = vunpack.c.l.b16 %v131
  %v506 = vunpack.c.h.b16 %v131
  %v507 = vunpack.c.l.b16 %v132
  %v508 = vunpack.c.h.b16 %v132
  %v509 = vunpack.c.l.b16 %v133
  %v510 = vunpack.c.h.b16 %v133
  %v511 = vunpack.c.l.b16 %v134
  %v512 = vunpack.c.h.b16 %v134
  %v513 = vunpack.c.l.b16 %v135
  %v514 = vunpack.c.h.b16 %v135
  %v515 = vunpack.c.l.b16 %v136
  %v516 = vunpack.c.h.b16 %v136
  %v517 = vunpack.c.l.b16 %v137
  %v518 = vunpack.c.h.b16 %v137
  %v519 = vunpack.c.l.b16 %v138
  %v520 = vunpack.c.h.b16 %v138
  %v521 = vunpack.c.l.b16 %v139
  %v522 = vunpack.c.h.b16 %v139
  %v523 = vunpack.c.l.b16 %v140
  %v524 = vunpack.c.h.b16 %v140
  %v525 = vunpack.c.l.b16 %v141
  %v526 = vunpack.c.h.b16 %v141
  %v527 = vunpack.c.l.b16 %v142
  %v528 = vunpack.c.h.b16 %v142
  %v529 = vunpack.c.l.b16 %v143
  %v530 = vunpack.c.h.b16 %v143
  %v531 = vunpack.c.l.b16 %v144
  %v532 = vunpack.c.h.b16 %v144
  %v533 = vunpack.c.l.b16 %v145
  %v534 = vunpack.c.h.b16 %v145
  %v535 = vunpack.c.l.b16 %v146
  %v536 = vunpack.c.h.b16 %v146
  %v537 = vunpack.c.l.b16 %v147
  %v538 = vunpack.c.h.b16 %v147
  %v539 = vunpack.c.l.b16 %v148
  %v540 = vunpack.c.h.b16 %v148
  %v541 = vunpack.c.l.b16 %v149
  %v542 = vunpack.c.h.b16 %v149
  %v543 = vunpack.c.l.b16 %v150
  %v544 = vunpack.c.h.b16 %v150
  %v545 = vunpack.c.l.b16 %v151
  %v546 = vunpack.c.h.b16 %v151
  %v547 = vunpack.c.l.b16 %v152
  %v548 = vunpack.c.h.b16 %v152
  %v549 = vunpack.c.l.b16 %v153
  %v550 = vunpack.c.h.b16 %v153
  %v551 = vunpack.c.l.b16 %v154
  %v552 = vunpack.c.h.b16 %v154
  %v553 = vunpack.c.l.b16 %v155
  %v554 = vunpack.c.h.b16 %v155
  %v555 = vunpack.c.l.b16 %v156
  %v556 = vunpack.c.h.b16 %v156
  %v557 = vunpack.c.l.b16 %v157
  %v558 = vunpack.c.h.b16 %v157
  %v559 = vunpack.c.l.b16 %v158
  %v560 = vunpack.c.h.b16 %v158
  %v561 = vunpack.c.l.b16 %v159
  %v562 = vunpack.c.h.b16 %v159
  %v563 = vunpack.c.l.b16 %v160
  %v564 = vunpack.c.h.b16 %v160
  %v565 = vunpack.c.l.b16 %v161
  %v566 = vunpack.c.h.b16 %v161
  %v567 = vunpack.c.l.b16 %v162
  %v568 = vunpack.c.h.b16 %v162
  %v569 = vpack.c.b16 %v317, %v313
  %v570 = vpack.c.b16 %v318, %v314
  %v571 = vpack.c.b16 %v319, %v315
  %v572 = vpack.c.b16 %v320, %v316
  %v573 = vpack.c.b16 %v325, %v321
  %v574 = vpack.c.b16 %v326, %v322
  %v575 = vpack.c.b16 %v327, %v323
  %v576 = vpack.c.b16 %v328, %v324
  %v577 = vpack.c.b16 %v333, %v329
  %v578 = vpack.c.b16 %v334, %v330
  %v579 = vpack.c.b16 %v335, %v331
  %v580 = vpack.c.b16 %v336, %v332
  %v581 = vpack.c.b16 %v341, %v337
  %v582 = vpack.c.b16 %v342, %v338
  %v583 = vpack.c.b16 %v343, %v339
  %v584 = vpack.c.b16 %v344, %v340
  %v585 = vpack.c.b16 %v349, %v345
  %v586 = vpack.c.b16 %v350, %v346
  %v587 = vpack.c.b16 %v351, %v347
  %v588 = vpack.c.b16 %v352, %v348
  %v589 = vpack.c.b16 %v357, %v353
  %v590 = vpack.c.b16 %v358, %v354
  %v591 = vpack.c.b16 %v359, %v355
  %v592 = vpack.c.b16 %v360, %v356
  %v593 = vpack.c.b16 %v365, %v361
  %v594 = vpack.c.b16 %v366, %v362
  %v595 = vpack.c.b16 %v367, %v363
  %v596 = vpack.c.b16 %v368, %v364
  %v597 = vpack.c.b16 %v373, %v369
  %v598 = vpack.c.b16 %v374, %v370
  %v599 = vpack.c.b16 %v375, %v371
  %v600 = vpack.c.b16 %v376, %v372
  %v601 = vpack.c.b16 %v381, %v377
  %v602 = vpack.c.b16 %v382, %v378
  %v603 = vpack.c.b16 %v383, %v379
  %v604 = vpack.c.b16 %v384, %v380
  %v605 = vpack.c.b16 %v389, %v385
  %v606 = vpack.c.b16 %v390, %v386
  %v607 = vpack.c.b16 %v391, %v387
  %v608 = vpack.c.b16 %v392, %v388
  %v609 = vpack.c.b16 %v397, %v393
  %v610 = vpack.c.b16 %v398, %v394
  %v611 = vpack.c.b16 %v399, %v395
  %v612 = vpack.c.b16 %v400, %v396
  %v613 = vpack.c.b16 %v405, %v401
  %v614 = vpack.c.b16 %v406, %v402
  %v615 = vpack.c.b16 %v407, %v403
  %v616 = vpack.c.b16 %v408, %v404
  %v617 = vpack.c.b16 %v413, %v409
  %v618 = vpack.c.b16 %v414, %v410
  %v619 = vpack.c.b16 %v415, %v411
  %v620 = vpack.c.b16 %v416, %v412
  %v621 = vpack.c.b16 %v421, %v417
  %v622 = vpack.c.b16 %v422, %v418
  %v623 = vpack.c.b16 %v423, %v419
  %v624 = vpack.c.b16 %v424, %v420
  %v625 = vpack.c.b16 %v429, %v425
  %v626 = vpack.c.b16 %v430, %v426
  %v627 = vpack.c.b16 %v431, %v427
  %v628 = vpack.c.b16 %v432, %v428
  %v629 = vpack.c.b16 %v437, %v433
  %v630 = vpack.c.b16 %v438, %v434
  %v631 = vpack.c.b16 %v439, %v435
  %v632 = vpack.c.b16 %v440, %v436
  %v633 = vpack.c.b16 %v445, %v441
  %v634 = vpack.c.b16 %v446, %v442
  %v635 = vpack.c.b16 %v447, %v443
  %v636 = vpack.c.b16 %v448, %v444
  %v637 = vpack.c.b16 %v453, %v449
  %v638 = vpack.c.b16 %v454, %v450
  %v639 = vpack.c.b16 %v455, %v451
  %v640 = vpack.c.b16 %v456, %v452
  %v641 = vpack.c.b16 %v461, %v457
  %v642 = vpack.c.b16 %v462, %v458
  %v643 = vpack.c.b16 %v463, %v459
  %v644 = vpack.c.b16 %v464, %v460
  %v645 = vpack.c.b16 %v469, %v465
  %v646 = vpack.c.b16 %v470, %v466
  %v647 = vpack.c.b16 %v471, %v467
  %v648 = vpack.c.b16 %v472, %v468
  %v649 = vpack.c.b16 %v477, %v473
  %v650 = vpack.c.b16 %v478, %v474
  %v651 = vpack.c.b16 %v479, %v475
  %v652 = vpack.c.b16 %v480, %v476
  %v653 = vpack.c.b16 %v485, %v481
  %v654 = vpack.c.b16 %v486, %v482
  %v655 = vpack.c.b16 %v487, %v483
  %v656 = vpack.c.b16 %v488, %v484
  %v657 = vpack.c.b16 %v493, %v489
  %v658 = vpack.c.b16 %v494, %v490
  %v659 = vpack.c.b16 %v495, %v491
  %v660 = vpack.c.b16 %v496, %v492
  %v661 = vpack.c.b16 %v501, %v497
  %v662 = vpack.c.b16 %v502, %v498
  %v663 = vpack.c.b16 %v503, %v499
  %v664 = vpack.c.b16 %v504, %v500
  %v665 = vpack.c.b16 %v509, %v505
  %v666 = vpack.c.b16 %v510, %v506
  %v667 = vpack.c.b16 %v511, %v507
  %v668 = vpack.c.b16 %v512, %v508
  %v669 = vpack.c.b16 %v517, %v513
  %v670 = vpack.c.b16 %v518, %v514
  %v671 = vpack.c.b16 %v519, %v515
  %v672 = vpack.c.b16 %v520, %v516
  %v673 = vpack.c.b16 %v525, %v521
  %v674 = vpack.c.b16 %v526, %v522
  %v675 = vpack.c.b16 %v527, %v523
  %v676 = vpack.c.b16 %v528, %v524
  %v677 = vpack.c.b16 %v533, %v529
  %v678 = vpack.c.b16 %v534, %v530
  %v679 = vpack.c.b16 %v535, %v531
  %v680 = vpack.c.b16 %v536, %v532
  %v681 = vpack.c.b16 %v541, %v537
  %v682 = vpack.c.b16 %v542, %v538
  %v683 = vpack.c.b16 %v543, %v539
  %v684 = vpack.c.b16 %v544, %v540
  %v685 = vpack.c.b16 %v549, %v545
  %v686 = vpack.c.b16 %v550, %v546
  %v687 = vpack.c.b16 %v551, %v547
  %v688 = vpack.c.b16 %v552, %v548
  %v689 = vpack.c.b16 %v557, %v553
  %v690 = vpack.c.b16 %v558, %v554
  %v691 = vpack.c.b16 %v559, %v555
  %v692 = vpack.c.b16 %v560, %v556
  %v693 = vpack.c.b16 %v565, %v561
  %v694 = vpack.c.b16 %v566, %v562
  %v695 = vpack.c.b16 %v567, %v563
  %v696 = vpack.c.b16 %v568, %v564
  %825 = vmatprep.subr.bf16.mxu0 %v570
  %826 = vmatpush1.bf16.msra.mxu0 %v569
  %827 = vmatprep.subr.bf16.mxu0 %v574
  %828 = vmatpush1.bf16.msra.mxu0 %v573
  %829 = vmatprep.subr.bf16.mxu0 %v578
  %830 = vmatpush1.bf16.msra.mxu0 %v577
  %831 = vmatprep.subr.bf16.mxu0 %v582
  %832 = vmatpush1.bf16.msra.mxu0 %v581
  %833 = vmatprep.subr.bf16.mxu0 %v586
  %834 = vmatpush1.bf16.msra.mxu0 %v585
  %835 = vmatprep.subr.bf16.mxu0 %v590
  %836 = vmatpush1.bf16.msra.mxu0 %v589
  %837 = vmatprep.subr.bf16.mxu0 %v594
  %838 = vmatpush1.bf16.msra.mxu0 %v593
  %839 = vmatprep.subr.bf16.mxu0 %v598
  %840 = vmatpush1.bf16.msra.mxu0 %v597
  %841 = vmatprep.subr.bf16.mxu0 %v602
  %842 = vmatpush1.bf16.msra.mxu0 %v601
  %843 = vmatprep.subr.bf16.mxu0 %v606
  %844 = vmatpush1.bf16.msra.mxu0 %v605
  %845 = vmatprep.subr.bf16.mxu0 %v610
  %846 = vmatpush1.bf16.msra.mxu0 %v609
  %847 = vmatprep.subr.bf16.mxu0 %v614
  %848 = vmatpush1.bf16.msra.mxu0 %v613
  %849 = vmatprep.subr.bf16.mxu0 %v618
  %850 = vmatpush1.bf16.msra.mxu0 %v617
  %851 = vmatprep.subr.bf16.mxu0 %v622
  %852 = vmatpush1.bf16.msra.mxu0 %v621
  %853 = vmatprep.subr.bf16.mxu0 %v626
  %854 = vmatpush1.bf16.msra.mxu0 %v625
  %855 = vmatprep.subr.bf16.mxu0 %v630
  %856 = vmatpush1.bf16.msra.mxu0 %v629
  %857 = vmatprep.mubr.bf16.mxu0 %v32
  %858 = vmatmul.mubr.bf16.gmra.mrb[0].mxu0 %v31
  %v859 = vpop.f32.mrb[0].mxu0
  %v860 = vadd.f32 %v168, %v859
  %v861 = vpop.f32.mrb[0].mxu0
  %v862 = vadd.f32 %v172, %v861
  %v863 = vpop.f32.mrb[0].mxu0
  %v864 = vpop.f32.mrb[0].mxu0
  %865 = vdwg.mxu0
  %866 = vmatprep.subr.bf16.mxu0 %v634
  %867 = vmatpush1.bf16.msra.mxu0 %v633
  %868 = vmatprep.subr.bf16.mxu0 %v638
  %869 = vmatpush1.bf16.msra.mxu0 %v637
  %870 = vmatprep.subr.bf16.mxu0 %v642
  %871 = vmatpush1.bf16.msra.mxu0 %v641
  %872 = vmatprep.subr.bf16.mxu0 %v646
  %873 = vmatpush1.bf16.msra.mxu0 %v645
  %874 = vmatprep.subr.bf16.mxu0 %v650
  %875 = vmatpush1.bf16.msra.mxu0 %v649
  %876 = vmatprep.subr.bf16.mxu0 %v654
  %877 = vmatpush1.bf16.msra.mxu0 %v653
  %878 = vmatprep.subr.bf16.mxu0 %v658
  %879 = vmatpush1.bf16.msra.mxu0 %v657
  %880 = vmatprep.subr.bf16.mxu0 %v662
  %881 = vmatpush1.bf16.msra.mxu0 %v661
  %882 = vmatprep.subr.bf16.mxu0 %v666
  %883 = vmatpush1.bf16.msra.mxu0 %v665
  %884 = vmatprep.subr.bf16.mxu0 %v670
  %885 = vmatpush1.bf16.msra.mxu0 %v669
  %886 = vmatprep.subr.bf16.mxu0 %v674
  %887 = vmatpush1.bf16.msra.mxu0 %v673
  %888 = vmatprep.subr.bf16.mxu0 %v678
  %889 = vmatpush1.bf16.msra.mxu0 %v677
  %890 = vmatprep.subr.bf16.mxu0 %v682
  %891 = vmatpush1.bf16.msra.mxu0 %v681
  %892 = vmatprep.subr.bf16.mxu0 %v686
  %893 = vmatpush1.bf16.msra.mxu0 %v685
  %894 = vmatprep.subr.bf16.mxu0 %v690
  %895 = vmatpush1.bf16.msra.mxu0 %v689
  %896 = vmatprep.subr.bf16.mxu0 %v694
  %897 = vmatpush1.bf16.msra.mxu0 %v693
  %898 = vmatprep.mubr.bf16.mxu0 %v34
  %899 = vmatmul.mubr.bf16.gmra.mrb[0].mxu0 %v33
  %v900 = vpop.f32.mrb[0].mxu0
  %v901 = vadd.f32 %v860, %v900
  %v902 = vpop.f32.mrb[0].mxu0
  %v903 = vadd.f32 %v862, %v902
  %v904 = vpop.f32.mrb[0].mxu0
  %v905 = vpop.f32.mrb[0].mxu0
  %906 = vdwg.mxu0
  %907 = vmatprep.subr.bf16.mxu0 %v572
  %908 = vmatpush1.bf16.msra.mxu0 %v571
  %909 = vmatprep.subr.bf16.mxu0 %v576
  %910 = vmatpush1.bf16.msra.mxu0 %v575
  %911 = vmatprep.subr.bf16.mxu0 %v580
  %912 = vmatpush1.bf16.msra.mxu0 %v579
  %913 = vmatprep.subr.bf16.mxu0 %v584
  %914 = vmatpush1.bf16.msra.mxu0 %v583
  %915 = vmatprep.subr.bf16.mxu0 %v588
  %916 = vmatpush1.bf16.msra.mxu0 %v587
  %917 = vmatprep.subr.bf16.mxu0 %v592
  %918 = vmatpush1.bf16.msra.mxu0 %v591
  %919 = vmatprep.subr.bf16.mxu0 %v596
  %920 = vmatpush1.bf16.msra.mxu0 %v595
  %921 = vmatprep.subr.bf16.mxu0 %v600
  %922 = vmatpush1.bf16.msra.mxu0 %v599
  %923 = vmatprep.subr.bf16.mxu0 %v604
  %924 = vmatpush1.bf16.msra.mxu0 %v603
  %925 = vmatprep.subr.bf16.mxu0 %v608
  %926 = vmatpush1.bf16.msra.mxu0 %v607
  %927 = vmatprep.subr.bf16.mxu0 %v612
  %928 = vmatpush1.bf16.msra.mxu0 %v611
  %929 = vmatprep.subr.bf16.mxu0 %v616
  %930 = vmatpush1.bf16.msra.mxu0 %v615
  %931 = vmatprep.subr.bf16.mxu0 %v620
  %932 = vmatpush1.bf16.msra.mxu0 %v619
  %933 = vmatprep.subr.bf16.mxu0 %v624
  %934 = vmatpush1.bf16.msra.mxu0 %v623
  %935 = vmatprep.subr.bf16.mxu0 %v628
  %936 = vmatpush1.bf16.msra.mxu0 %v627
  %937 = vmatprep.subr.bf16.mxu0 %v632
  %938 = vmatpush1.bf16.msra.mxu0 %v631
  %939 = vmatprep.mubr.bf16.mxu0 %v32
  %940 = vmatmul.mubr.bf16.gmra.mrb[0].mxu0 %v31
  %v941 = vpop.f32.mrb[0].mxu0
  %v942 = vadd.f32 %v176, %v941
  %v943 = vpop.f32.mrb[0].mxu0
  %v944 = vadd.f32 %v180, %v943
  %v945 = vpop.f32.mrb[0].mxu0
  %v946 = vpop.f32.mrb[0].mxu0
  %947 = vdwg.mxu0
  %948 = vmatprep.subr.bf16.mxu0 %v636
  %949 = vmatpush1.bf16.msra.mxu0 %v635
  %950 = vmatprep.subr.bf16.mxu0 %v640
  %951 = vmatpush1.bf16.msra.mxu0 %v639
  %952 = vmatprep.subr.bf16.mxu0 %v644
  %953 = vmatpush1.bf16.msra.mxu0 %v643
  %954 = vmatprep.subr.bf16.mxu0 %v648
  %955 = vmatpush1.bf16.msra.mxu0 %v647
  %956 = vmatprep.subr.bf16.mxu0 %v652
  %957 = vmatpush1.bf16.msra.mxu0 %v651
  %958 = vmatprep.subr.bf16.mxu0 %v656
  %959 = vmatpush1.bf16.msra.mxu0 %v655
  %960 = vmatprep.subr.bf16.mxu0 %v660
  %961 = vmatpush1.bf16.msra.mxu0 %v659
  %962 = vmatprep.subr.bf16.mxu0 %v664
  %963 = vmatpush1.bf16.msra.mxu0 %v663
  %964 = vmatprep.subr.bf16.mxu0 %v668
  %965 = vmatpush1.bf16.msra.mxu0 %v667
  %966 = vmatprep.subr.bf16.mxu0 %v672
  %967 = vmatpush1.bf16.msra.mxu0 %v671
  %968 = vmatprep.subr.bf16.mxu0 %v676
  %969 = vmatpush1.bf16.msra.mxu0 %v675
  %970 = vmatprep.subr.bf16.mxu0 %v680
  %971 = vmatpush1.bf16.msra.mxu0 %v679
  %972 = vmatprep.subr.bf16.mxu0 %v684
  %973 = vmatpush1.bf16.msra.mxu0 %v683
  %974 = vmatprep.subr.bf16.mxu0 %v688
  %975 = vmatpush1.bf16.msra.mxu0 %v687
  %976 = vmatprep.subr.bf16.mxu0 %v692
  %977 = vmatpush1.bf16.msra.mxu0 %v691
  %978 = vmatprep.subr.bf16.mxu0 %v696
  %979 = vmatpush1.bf16.msra.mxu0 %v695
  %980 = vmatprep.mubr.bf16.mxu0 %v34
  %981 = vmatmul.mubr.bf16.gmra.mrb[0].mxu0 %v33
  %v982 = vpop.f32.mrb[0].mxu0
  %v983 = vadd.f32 %v942, %v982
  %v984 = vpop.f32.mrb[0].mxu0
  %v985 = vadd.f32 %v944, %v984
  %v986 = vpop.f32.mrb[0].mxu0
  %v987 = vpop.f32.mrb[0].mxu0
  %988 = vdwg.mxu0
  %v989 = vmax.f32 %v901, 0.0
  %v990 = vmax.f32 %v903, 0.0
  %v991 = vmax.f32 %v983, 0.0
  %v992 = vmax.f32 %v985, 0.0
  %v993 = vpack.c.bf16 %v989, %v989
  %v994 = vpack.c.bf16 %v990, %v990
  %v995 = vpack.c.bf16 %v991, %v991
  %v996 = vpack.c.bf16 %v992, %v992
  %v997 = vld [vmem:[%s3] sm:$0xff]
  %v998 = vld [vmem:[%s3 + $0x8] sm:$0xff]
  %v999 = vld [vmem:[%s3 + $0x10] sm:$0xff]
  %v1000 = vld [vmem:[%s3 + $0x18] sm:$0xff]
  %v1001 = vld [vmem:[%s3 + $0x20] sm:$0xff]
  %v1002 = vld [vmem:[%s3 + $0x28] sm:$0xff]
  %v1003 = vld [vmem:[%s3 + $0x30] sm:$0xff]
  %v1004 = vld [vmem:[%s3 + $0x38] sm:$0xff]
  %v1005 = vld [vmem:[%s3 + $0x40] sm:$0xff]
  %v1006 = vld [vmem:[%s3 + $0x48] sm:$0xff]
  %v1007 = vld [vmem:[%s3 + $0x50] sm:$0xff]
  %v1008 = vld [vmem:[%s3 + $0x58] sm:$0xff]
  %v1009 = vld [vmem:[%s3 + $0x60] sm:$0xff]
  %v1010 = vld [vmem:[%s3 + $0x68] sm:$0xff]
  %v1011 = vld [vmem:[%s3 + $0x70] sm:$0xff]
  %v1012 = vld [vmem:[%s3 + $0x78] sm:$0xff]
  %v1013 = vld [vmem:[%s3 + $0x80] sm:$0xff]
  %v1014 = vld [vmem:[%s3 + $0x88] sm:$0xff]
  %v1015 = vld [vmem:[%s3 + $0x90] sm:$0xff]
  %v1016 = vld [vmem:[%s3 + $0x98] sm:$0xff]
  %v1017 = vld [vmem:[%s3 + $0xa0] sm:$0xff]
  %v1018 = vld [vmem:[%s3 + $0xa8] sm:$0xff]
  %v1019 = vld [vmem:[%s3 + $0xb0] sm:$0xff]
  %v1020 = vld [vmem:[%s3 + $0xb8] sm:$0xff]
  %v1021 = vld [vmem:[%s3 + $0xc0] sm:$0xff]
  %v1022 = vld [vmem:[%s3 + $0xc8] sm:$0xff]
  %v1023 = vld [vmem:[%s3 + $0xd0] sm:$0xff]
  %v1024 = vld [vmem:[%s3 + $0xd8] sm:$0xff]
  %v1025 = vld [vmem:[%s3 + $0xe0] sm:$0xff]
  %v1026 = vld [vmem:[%s3 + $0xe8] sm:$0xff]
  %v1027 = vld [vmem:[%s3 + $0xf0] sm:$0xff]
  %v1028 = vld [vmem:[%s3 + $0xf8] sm:$0xff]
  %v1029 = vld [vmem:[%s3 + $0x100] sm:$0xff]
  %v1030 = vld [vmem:[%s3 + $0x108] sm:$0xff]
  %v1031 = vld [vmem:[%s3 + $0x110] sm:$0xff]
  %v1032 = vld [vmem:[%s3 + $0x118] sm:$0xff]
  %v1033 = vld [vmem:[%s3 + $0x120] sm:$0xff]
  %v1034 = vld [vmem:[%s3 + $0x128] sm:$0xff]
  %v1035 = vld [vmem:[%s3 + $0x130] sm:$0xff]
  %v1036 = vld [vmem:[%s3 + $0x138] sm:$0xff]
  %v1037 = vld [vmem:[%s3 + $0x140] sm:$0xff]
  %v1038 = vld [vmem:[%s3 + $0x148] sm:$0xff]
  %v1039 = vld [vmem:[%s3 + $0x150] sm:$0xff]
  %v1040 = vld [vmem:[%s3 + $0x158] sm:$0xff]
  %v1041 = vld [vmem:[%s3 + $0x160] sm:$0xff]
  %v1042 = vld [vmem:[%s3 + $0x168] sm:$0xff]
  %v1043 = vld [vmem:[%s3 + $0x170] sm:$0xff]
  %v1044 = vld [vmem:[%s3 + $0x178] sm:$0xff]
  %v1045 = vld [vmem:[%s3 + $0x180] sm:$0xff]
  %v1046 = vld [vmem:[%s3 + $0x188] sm:$0xff]
  %v1047 = vld [vmem:[%s3 + $0x190] sm:$0xff]
  %v1048 = vld [vmem:[%s3 + $0x198] sm:$0xff]
  %v1049 = vld [vmem:[%s3 + $0x1a0] sm:$0xff]
  %v1050 = vld [vmem:[%s3 + $0x1a8] sm:$0xff]
  %v1051 = vld [vmem:[%s3 + $0x1b0] sm:$0xff]
  %v1052 = vld [vmem:[%s3 + $0x1b8] sm:$0xff]
  %v1053 = vld [vmem:[%s3 + $0x1c0] sm:$0xff]
  %v1054 = vld [vmem:[%s3 + $0x1c8] sm:$0xff]
  %v1055 = vld [vmem:[%s3 + $0x1d0] sm:$0xff]
  %v1056 = vld [vmem:[%s3 + $0x1d8] sm:$0xff]
  %v1057 = vld [vmem:[%s3 + $0x1e0] sm:$0xff]
  %v1058 = vld [vmem:[%s3 + $0x1e8] sm:$0xff]
  %v1059 = vld [vmem:[%s3 + $0x1f0] sm:$0xff]
  %v1060 = vld [vmem:[%s3 + $0x1f8] sm:$0xff]
  %v1061 = vld [vmem:[%s4] sm:$0x3]
  %v1063 = vlaneseq
  %v1064 = vshrl.u32 %v1063, 7
  %v1065 = vsub.s32 0, %v1064
  %v1066 = vrot.slane %v1061, %v1065
  %v1067 = vlaneseq
  %v1068 = vshrl.u32 %v1067, 7
  %v1069 = vsub.s32 1, %v1068
  %v1070 = vrot.slane %v1061, %v1069
  %v1137 = vunpack.c.l.b16 %v997
  %v1138 = vunpack.c.h.b16 %v997
  %v1139 = vunpack.c.l.b16 %v998
  %v1140 = vunpack.c.h.b16 %v998
  %v1141 = vunpack.c.l.b16 %v999
  %v1142 = vunpack.c.h.b16 %v999
  %v1143 = vunpack.c.l.b16 %v1000
  %v1144 = vunpack.c.h.b16 %v1000
  %v1145 = vunpack.c.l.b16 %v1001
  %v1146 = vunpack.c.h.b16 %v1001
  %v1147 = vunpack.c.l.b16 %v1002
  %v1148 = vunpack.c.h.b16 %v1002
  %v1149 = vunpack.c.l.b16 %v1003
  %v1150 = vunpack.c.h.b16 %v1003
  %v1151 = vunpack.c.l.b16 %v1004
  %v1152 = vunpack.c.h.b16 %v1004
  %v1153 = vunpack.c.l.b16 %v1005
  %v1154 = vunpack.c.h.b16 %v1005
  %v1155 = vunpack.c.l.b16 %v1006
  %v1156 = vunpack.c.h.b16 %v1006
  %v1157 = vunpack.c.l.b16 %v1007
  %v1158 = vunpack.c.h.b16 %v1007
  %v1159 = vunpack.c.l.b16 %v1008
  %v1160 = vunpack.c.h.b16 %v1008
  %v1161 = vunpack.c.l.b16 %v1009
  %v1162 = vunpack.c.h.b16 %v1009
  %v1163 = vunpack.c.l.b16 %v1010
  %v1164 = vunpack.c.h.b16 %v1010
  %v1165 = vunpack.c.l.b16 %v1011
  %v1166 = vunpack.c.h.b16 %v1011
  %v1167 = vunpack.c.l.b16 %v1012
  %v1168 = vunpack.c.h.b16 %v1012
  %v1169 = vunpack.c.l.b16 %v1013
  %v1170 = vunpack.c.h.b16 %v1013
  %v1171 = vunpack.c.l.b16 %v1014
  %v1172 = vunpack.c.h.b16 %v1014
  %v1173 = vunpack.c.l.b16 %v1015
  %v1174 = vunpack.c.h.b16 %v1015
  %v1175 = vunpack.c.l.b16 %v1016
  %v1176 = vunpack.c.h.b16 %v1016
  %v1177 = vunpack.c.l.b16 %v1017
  %v1178 = vunpack.c.h.b16 %v1017
  %v1179 = vunpack.c.l.b16 %v1018
  %v1180 = vunpack.c.h.b16 %v1018
  %v1181 = vunpack.c.l.b16 %v1019
  %v1182 = vunpack.c.h.b16 %v1019
  %v1183 = vunpack.c.l.b16 %v1020
  %v1184 = vunpack.c.h.b16 %v1020
  %v1185 = vunpack.c.l.b16 %v1021
  %v1186 = vunpack.c.h.b16 %v1021
  %v1187 = vunpack.c.l.b16 %v1022
  %v1188 = vunpack.c.h.b16 %v1022
  %v1189 = vunpack.c.l.b16 %v1023
  %v1190 = vunpack.c.h.b16 %v1023
  %v1191 = vunpack.c.l.b16 %v1024
  %v1192 = vunpack.c.h.b16 %v1024
  %v1193 = vunpack.c.l.b16 %v1025
  %v1194 = vunpack.c.h.b16 %v1025
  %v1195 = vunpack.c.l.b16 %v1026
  %v1196 = vunpack.c.h.b16 %v1026
  %v1197 = vunpack.c.l.b16 %v1027
  %v1198 = vunpack.c.h.b16 %v1027
  %v1199 = vunpack.c.l.b16 %v1028
  %v1200 = vunpack.c.h.b16 %v1028
  %v1201 = vunpack.c.l.b16 %v1029
  %v1202 = vunpack.c.h.b16 %v1029
  %v1203 = vunpack.c.l.b16 %v1030
  %v1204 = vunpack.c.h.b16 %v1030
  %v1205 = vunpack.c.l.b16 %v1031
  %v1206 = vunpack.c.h.b16 %v1031
  %v1207 = vunpack.c.l.b16 %v1032
  %v1208 = vunpack.c.h.b16 %v1032
  %v1209 = vunpack.c.l.b16 %v1033
  %v1210 = vunpack.c.h.b16 %v1033
  %v1211 = vunpack.c.l.b16 %v1034
  %v1212 = vunpack.c.h.b16 %v1034
  %v1213 = vunpack.c.l.b16 %v1035
  %v1214 = vunpack.c.h.b16 %v1035
  %v1215 = vunpack.c.l.b16 %v1036
  %v1216 = vunpack.c.h.b16 %v1036
  %v1217 = vunpack.c.l.b16 %v1037
  %v1218 = vunpack.c.h.b16 %v1037
  %v1219 = vunpack.c.l.b16 %v1038
  %v1220 = vunpack.c.h.b16 %v1038
  %v1221 = vunpack.c.l.b16 %v1039
  %v1222 = vunpack.c.h.b16 %v1039
  %v1223 = vunpack.c.l.b16 %v1040
  %v1224 = vunpack.c.h.b16 %v1040
  %v1225 = vunpack.c.l.b16 %v1041
  %v1226 = vunpack.c.h.b16 %v1041
  %v1227 = vunpack.c.l.b16 %v1042
  %v1228 = vunpack.c.h.b16 %v1042
  %v1229 = vunpack.c.l.b16 %v1043
  %v1230 = vunpack.c.h.b16 %v1043
  %v1231 = vunpack.c.l.b16 %v1044
  %v1232 = vunpack.c.h.b16 %v1044
  %v1233 = vunpack.c.l.b16 %v1045
  %v1234 = vunpack.c.h.b16 %v1045
  %v1235 = vunpack.c.l.b16 %v1046
  %v1236 = vunpack.c.h.b16 %v1046
  %v1237 = vunpack.c.l.b16 %v1047
  %v1238 = vunpack.c.h.b16 %v1047
  %v1239 = vunpack.c.l.b16 %v1048
  %v1240 = vunpack.c.h.b16 %v1048
  %v1241 = vunpack.c.l.b16 %v1049
  %v1242 = vunpack.c.h.b16 %v1049
  %v1243 = vunpack.c.l.b16 %v1050
  %v1244 = vunpack.c.h.b16 %v1050
  %v1245 = vunpack.c.l.b16 %v1051
  %v1246 = vunpack.c.h.b16 %v1051
  %v1247 = vunpack.c.l.b16 %v1052
  %v1248 = vunpack.c.h.b16 %v1052
  %v1249 = vunpack.c.l.b16 %v1053
  %v1250 = vunpack.c.h.b16 %v1053
  %v1251 = vunpack.c.l.b16 %v1054
  %v1252 = vunpack.c.h.b16 %v1054
  %v1253 = vunpack.c.l.b16 %v1055
  %v1254 = vunpack.c.h.b16 %v1055
  %v1255 = vunpack.c.l.b16 %v1056
  %v1256 = vunpack.c.h.b16 %v1056
  %v1257 = vunpack.c.l.b16 %v1057
  %v1258 = vunpack.c.h.b16 %v1057
  %v1259 = vunpack.c.l.b16 %v1058
  %v1260 = vunpack.c.h.b16 %v1058
  %v1261 = vunpack.c.l.b16 %v1059
  %v1262 = vunpack.c.h.b16 %v1059
  %v1263 = vunpack.c.l.b16 %v1060
  %v1264 = vunpack.c.h.b16 %v1060
  %v1265 = vpack.c.b16 %v1139, %v1137
  %v1266 = vpack.c.b16 %v1140, %v1138
  %v1267 = vpack.c.b16 %v1143, %v1141
  %v1268 = vpack.c.b16 %v1144, %v1142
  %v1269 = vpack.c.b16 %v1147, %v1145
  %v1270 = vpack.c.b16 %v1148, %v1146
  %v1271 = vpack.c.b16 %v1151, %v1149
  %v1272 = vpack.c.b16 %v1152, %v1150
  %v1273 = vpack.c.b16 %v1155, %v1153
  %v1274 = vpack.c.b16 %v1156, %v1154
  %v1275 = vpack.c.b16 %v1159, %v1157
  %v1276 = vpack.c.b16 %v1160, %v1158
  %v1277 = vpack.c.b16 %v1163, %v1161
  %v1278 = vpack.c.b16 %v1164, %v1162
  %v1279 = vpack.c.b16 %v1167, %v1165
  %v1280 = vpack.c.b16 %v1168, %v1166
  %v1281 = vpack.c.b16 %v1171, %v1169
  %v1282 = vpack.c.b16 %v1172, %v1170
  %v1283 = vpack.c.b16 %v1175, %v1173
  %v1284 = vpack.c.b16 %v1176, %v1174
  %v1285 = vpack.c.b16 %v1179, %v1177
  %v1286 = vpack.c.b16 %v1180, %v1178
  %v1287 = vpack.c.b16 %v1183, %v1181
  %v1288 = vpack.c.b16 %v1184, %v1182
  %v1289 = vpack.c.b16 %v1187, %v1185
  %v1290 = vpack.c.b16 %v1188, %v1186
  %v1291 = vpack.c.b16 %v1191, %v1189
  %v1292 = vpack.c.b16 %v1192, %v1190
  %v1293 = vpack.c.b16 %v1195, %v1193
  %v1294 = vpack.c.b16 %v1196, %v1194
  %v1295 = vpack.c.b16 %v1199, %v1197
  %v1296 = vpack.c.b16 %v1200, %v1198
  %v1297 = vpack.c.b16 %v1203, %v1201
  %v1298 = vpack.c.b16 %v1204, %v1202
  %v1299 = vpack.c.b16 %v1207, %v1205
  %v1300 = vpack.c.b16 %v1208, %v1206
  %v1301 = vpack.c.b16 %v1211, %v1209
  %v1302 = vpack.c.b16 %v1212, %v1210
  %v1303 = vpack.c.b16 %v1215, %v1213
  %v1304 = vpack.c.b16 %v1216, %v1214
  %v1305 = vpack.c.b16 %v1219, %v1217
  %v1306 = vpack.c.b16 %v1220, %v1218
  %v1307 = vpack.c.b16 %v1223, %v1221
  %v1308 = vpack.c.b16 %v1224, %v1222
  %v1309 = vpack.c.b16 %v1227, %v1225
  %v1310 = vpack.c.b16 %v1228, %v1226
  %v1311 = vpack.c.b16 %v1231, %v1229
  %v1312 = vpack.c.b16 %v1232, %v1230
  %v1313 = vpack.c.b16 %v1235, %v1233
  %v1314 = vpack.c.b16 %v1236, %v1234
  %v1315 = vpack.c.b16 %v1239, %v1237
  %v1316 = vpack.c.b16 %v1240, %v1238
  %v1317 = vpack.c.b16 %v1243, %v1241
  %v1318 = vpack.c.b16 %v1244, %v1242
  %v1319 = vpack.c.b16 %v1247, %v1245
  %v1320 = vpack.c.b16 %v1248, %v1246
  %v1321 = vpack.c.b16 %v1251, %v1249
  %v1322 = vpack.c.b16 %v1252, %v1250
  %v1323 = vpack.c.b16 %v1255, %v1253
  %v1324 = vpack.c.b16 %v1256, %v1254
  %v1325 = vpack.c.b16 %v1259, %v1257
  %v1326 = vpack.c.b16 %v1260, %v1258
  %v1327 = vpack.c.b16 %v1263, %v1261
  %v1328 = vpack.c.b16 %v1264, %v1262
  %1393 = vmatprep.subr.bf16.mxu0 %v1266
  %1394 = vmatpush1.bf16.msra.mxu0 %v1265
  %1395 = vmatprep.subr.bf16.mxu0 %v1268
  %1396 = vmatpush1.bf16.msra.mxu0 %v1267
  %1397 = vmatprep.subr.bf16.mxu0 %v1270
  %1398 = vmatpush1.bf16.msra.mxu0 %v1269
  %1399 = vmatprep.subr.bf16.mxu0 %v1272
  %1400 = vmatpush1.bf16.msra.mxu0 %v1271
  %1401 = vmatprep.subr.bf16.mxu0 %v1274
  %1402 = vmatpush1.bf16.msra.mxu0 %v1273
  %1403 = vmatprep.subr.bf16.mxu0 %v1276
  %1404 = vmatpush1.bf16.msra.mxu0 %v1275
  %1405 = vmatprep.subr.bf16.mxu0 %v1278
  %1406 = vmatpush1.bf16.msra.mxu0 %v1277
  %1407 = vmatprep.subr.bf16.mxu0 %v1280
  %1408 = vmatpush1.bf16.msra.mxu0 %v1279
  %1409 = vmatprep.subr.bf16.mxu0 %v1282
  %1410 = vmatpush1.bf16.msra.mxu0 %v1281
  %1411 = vmatprep.subr.bf16.mxu0 %v1284
  %1412 = vmatpush1.bf16.msra.mxu0 %v1283
  %1413 = vmatprep.subr.bf16.mxu0 %v1286
  %1414 = vmatpush1.bf16.msra.mxu0 %v1285
  %1415 = vmatprep.subr.bf16.mxu0 %v1288
  %1416 = vmatpush1.bf16.msra.mxu0 %v1287
  %1417 = vmatprep.subr.bf16.mxu0 %v1290
  %1418 = vmatpush1.bf16.msra.mxu0 %v1289
  %1419 = vmatprep.subr.bf16.mxu0 %v1292
  %1420 = vmatpush1.bf16.msra.mxu0 %v1291
  %1421 = vmatprep.subr.bf16.mxu0 %v1294
  %1422 = vmatpush1.bf16.msra.mxu0 %v1293
  %1423 = vmatprep.subr.bf16.mxu0 %v1296
  %1424 = vmatpush1.bf16.msra.mxu0 %v1295
  %1425 = vmatprep.mubr.bf16.mxu0 %v994
  %1426 = vmatmul.mubr.bf16.gmra.mrb[0].mxu0 %v993
  %v1427 = vpop.f32.mrb[0].mxu0
  %v1428 = vadd.f32 %v1066, %v1427
  %v1429 = vpop.f32.mrb[0].mxu0
  %v1430 = vadd.f32 %v1070, %v1429
  %v1431 = vpop.f32.mrb[0].mxu0
  %v1432 = vpop.f32.mrb[0].mxu0
  %1433 = vdwg.mxu0
  %1434 = vmatprep.subr.bf16.mxu0 %v1298
  %1435 = vmatpush1.bf16.msra.mxu0 %v1297
  %1436 = vmatprep.subr.bf16.mxu0 %v1300
  %1437 = vmatpush1.bf16.msra.mxu0 %v1299
  %1438 = vmatprep.subr.bf16.mxu0 %v1302
  %1439 = vmatpush1.bf16.msra.mxu0 %v1301
  %1440 = vmatprep.subr.bf16.mxu0 %v1304
  %1441 = vmatpush1.bf16.msra.mxu0 %v1303
  %1442 = vmatprep.subr.bf16.mxu0 %v1306
  %1443 = vmatpush1.bf16.msra.mxu0 %v1305
  %1444 = vmatprep.subr.bf16.mxu0 %v1308
  %1445 = vmatpush1.bf16.msra.mxu0 %v1307
  %1446 = vmatprep.subr.bf16.mxu0 %v1310
  %1447 = vmatpush1.bf16.msra.mxu0 %v1309
  %1448 = vmatprep.subr.bf16.mxu0 %v1312
  %1449 = vmatpush1.bf16.msra.mxu0 %v1311
  %1450 = vmatprep.subr.bf16.mxu0 %v1314
  %1451 = vmatpush1.bf16.msra.mxu0 %v1313
  %1452 = vmatprep.subr.bf16.mxu0 %v1316
  %1453 = vmatpush1.bf16.msra.mxu0 %v1315
  %1454 = vmatprep.subr.bf16.mxu0 %v1318
  %1455 = vmatpush1.bf16.msra.mxu0 %v1317
  %1456 = vmatprep.subr.bf16.mxu0 %v1320
  %1457 = vmatpush1.bf16.msra.mxu0 %v1319
  %1458 = vmatprep.subr.bf16.mxu0 %v1322
  %1459 = vmatpush1.bf16.msra.mxu0 %v1321
  %1460 = vmatprep.subr.bf16.mxu0 %v1324
  %1461 = vmatpush1.bf16.msra.mxu0 %v1323
  %1462 = vmatprep.subr.bf16.mxu0 %v1326
  %1463 = vmatpush1.bf16.msra.mxu0 %v1325
  %1464 = vmatprep.subr.bf16.mxu0 %v1328
  %1465 = vmatpush1.bf16.msra.mxu0 %v1327
  %1466 = vmatprep.mubr.bf16.mxu0 %v996
  %1467 = vmatmul.mubr.bf16.gmra.mrb[0].mxu0 %v995
  %v1468 = vpop.f32.mrb[0].mxu0
  %v1469 = vadd.f32 %v1428, %v1468
  %v1470 = vpop.f32.mrb[0].mxu0
  %v1471 = vadd.f32 %v1430, %v1470
  %v1472 = vpop.f32.mrb[0].mxu0
  %v1473 = vpop.f32.mrb[0].mxu0
  %1474 = vdwg.mxu0
  %v1475 = vmax.f32 %v1469, 0.0
  %v1476 = vmax.f32 %v1471, 0.0
  %v1477 = vpack.c.bf16 %v1475, %v1475
  %v1478 = vpack.c.bf16 %v1476, %v1476
  %v1479 = vld [vmem:[%s5] sm:$0xf]
  %v1480 = vld [vmem:[%s5 + $0x4] sm:$0xf]
  %v1481 = vld [vmem:[%s5 + $0x8] sm:$0xf]
  %v1482 = vld [vmem:[%s5 + $0xc] sm:$0xf]
  %v1483 = vld [vmem:[%s5 + $0x10] sm:$0xf]
  %v1484 = vld [vmem:[%s5 + $0x14] sm:$0xf]
  %v1485 = vld [vmem:[%s5 + $0x18] sm:$0xf]
  %v1486 = vld [vmem:[%s5 + $0x1c] sm:$0xf]
  %v1487 = vld [vmem:[%s5 + $0x20] sm:$0xf]
  %v1488 = vld [vmem:[%s5 + $0x24] sm:$0xf]
  %v1489 = vld [vmem:[%s5 + $0x28] sm:$0xf]
  %v1490 = vld [vmem:[%s5 + $0x2c] sm:$0xf]
  %v1491 = vld [vmem:[%s5 + $0x30] sm:$0xf]
  %v1492 = vld [vmem:[%s5 + $0x34] sm:$0xf]
  %v1493 = vld [vmem:[%s5 + $0x38] sm:$0xf]
  %v1494 = vld [vmem:[%s5 + $0x3c] sm:$0xf]
  %v1495 = vld [vmem:[%s5 + $0x40] sm:$0xf]
  %v1496 = vld [vmem:[%s5 + $0x44] sm:$0xf]
  %v1497 = vld [vmem:[%s5 + $0x48] sm:$0xf]
  %v1498 = vld [vmem:[%s5 + $0x4c] sm:$0xf]
  %v1499 = vld [vmem:[%s5 + $0x50] sm:$0xf]
  %v1500 = vld [vmem:[%s5 + $0x54] sm:$0xf]
  %v1501 = vld [vmem:[%s5 + $0x58] sm:$0xf]
  %v1502 = vld [vmem:[%s5 + $0x5c] sm:$0xf]
  %v1503 = vld [vmem:[%s5 + $0x60] sm:$0xf]
  %v1504 = vld [vmem:[%s5 + $0x64] sm:$0xf]
  %v1505 = vld [vmem:[%s5 + $0x68] sm:$0xf]
  %v1506 = vld [vmem:[%s5 + $0x6c] sm:$0xf]
  %v1507 = vld [vmem:[%s5 + $0x70] sm:$0xf]
  %v1508 = vld [vmem:[%s5 + $0x74] sm:$0xf]
  %v1509 = vld [vmem:[%s5 + $0x78] sm:$0xf]
  %v1510 = vld [vmem:[%s5 + $0x7c] sm:$0xf]
  %v1511 = vld [vmem:[%s6] sm:$0x1]
  %v1513 = vlaneseq
  %v1514 = vshrl.u32 %v1513, 7
  %v1515 = vsub.s32 0, %v1514
  %v1516 = vrot.slane %v1511, %v1515
  %v1550 = vunpack.c.l.b16 %v1479
  %v1551 = vunpack.c.l.b16 %v1480
  %v1552 = vunpack.c.l.b16 %v1481
  %v1553 = vunpack.c.l.b16 %v1482
  %v1554 = vunpack.c.l.b16 %v1483
  %v1555 = vunpack.c.l.b16 %v1484
  %v1556 = vunpack.c.l.b16 %v1485
  %v1557 = vunpack.c.l.b16 %v1486
  %v1558 = vunpack.c.l.b16 %v1487
  %v1559 = vunpack.c.l.b16 %v1488
  %v1560 = vunpack.c.l.b16 %v1489
  %v1561 = vunpack.c.l.b16 %v1490
  %v1562 = vunpack.c.l.b16 %v1491
  %v1563 = vunpack.c.l.b16 %v1492
  %v1564 = vunpack.c.l.b16 %v1493
  %v1565 = vunpack.c.l.b16 %v1494
  %v1566 = vunpack.c.l.b16 %v1495
  %v1567 = vunpack.c.l.b16 %v1496
  %v1568 = vunpack.c.l.b16 %v1497
  %v1569 = vunpack.c.l.b16 %v1498
  %v1570 = vunpack.c.l.b16 %v1499
  %v1571 = vunpack.c.l.b16 %v1500
  %v1572 = vunpack.c.l.b16 %v1501
  %v1573 = vunpack.c.l.b16 %v1502
  %v1574 = vunpack.c.l.b16 %v1503
  %v1575 = vunpack.c.l.b16 %v1504
  %v1576 = vunpack.c.l.b16 %v1505
  %v1577 = vunpack.c.l.b16 %v1506
  %v1578 = vunpack.c.l.b16 %v1507
  %v1579 = vunpack.c.l.b16 %v1508
  %v1580 = vunpack.c.l.b16 %v1509
  %v1581 = vunpack.c.l.b16 %v1510
  %v1582 = vpack.c.b16 %v1551, %v1550
  %v1583 = vpack.c.b16 %v1553, %v1552
  %v1584 = vpack.c.b16 %v1555, %v1554
  %v1585 = vpack.c.b16 %v1557, %v1556
  %v1586 = vpack.c.b16 %v1559, %v1558
  %v1587 = vpack.c.b16 %v1561, %v1560
  %v1588 = vpack.c.b16 %v1563, %v1562
  %v1589 = vpack.c.b16 %v1565, %v1564
  %v1590 = vpack.c.b16 %v1567, %v1566
  %v1591 = vpack.c.b16 %v1569, %v1568
  %v1592 = vpack.c.b16 %v1571, %v1570
  %v1593 = vpack.c.b16 %v1573, %v1572
  %v1594 = vpack.c.b16 %v1575, %v1574
  %v1595 = vpack.c.b16 %v1577, %v1576
  %v1596 = vpack.c.b16 %v1579, %v1578
  %v1597 = vpack.c.b16 %v1581, %v1580
  %1614 = vmatprep.subr.bf16.mxu0 0
  %1615 = vmatpush1.bf16.msra.mxu0 %v1582
  %1616 = vmatprep.subr.bf16.mxu0 0
  %1617 = vmatpush1.bf16.msra.mxu0 %v1583
  %1618 = vmatprep.subr.bf16.mxu0 0
  %1619 = vmatpush1.bf16.msra.mxu0 %v1584
  %1620 = vmatprep.subr.bf16.mxu0 0
  %1621 = vmatpush1.bf16.msra.mxu0 %v1585
  %1622 = vmatprep.subr.bf16.mxu0 0
  %1623 = vmatpush1.bf16.msra.mxu0 %v1586
  %1624 = vmatprep.subr.bf16.mxu0 0
  %1625 = vmatpush1.bf16.msra.mxu0 %v1587
  %1626 = vmatprep.subr.bf16.mxu0 0
  %1627 = vmatpush1.bf16.msra.mxu0 %v1588
  %1628 = vmatprep.subr.bf16.mxu0 0
  %1629 = vmatpush1.bf16.msra.mxu0 %v1589
  %1630 = vmatprep.subr.bf16.mxu0 0
  %1631 = vmatpush1.bf16.msra.mxu0 %v1590
  %1632 = vmatprep.subr.bf16.mxu0 0
  %1633 = vmatpush1.bf16.msra.mxu0 %v1591
  %1634 = vmatprep.subr.bf16.mxu0 0
  %1635 = vmatpush1.bf16.msra.mxu0 %v1592
  %1636 = vmatprep.subr.bf16.mxu0 0
  %1637 = vmatpush1.bf16.msra.mxu0 %v1593
  %1638 = vmatprep.subr.bf16.mxu0 0
  %1639 = vmatpush1.bf16.msra.mxu0 %v1594
  %1640 = vmatprep.subr.bf16.mxu0 0
  %1641 = vmatpush1.bf16.msra.mxu0 %v1595
  %1642 = vmatprep.subr.bf16.mxu0 0
  %1643 = vmatpush1.bf16.msra.mxu0 %v1596
  %1644 = vmatprep.subr.bf16.mxu0 0
  %1645 = vmatpush1.bf16.msra.mxu0 %v1597
  %1646 = vmatprep.mubr.bf16.mxu0 %v1478
  %1647 = vmatmul.mubr.bf16.gmra.mrb[0].mxu0 %v1477
  %v1648 = vpop.f32.mrb[0].mxu0
  %v1649 = vadd.f32 %v1516, %v1648
  %v1650 = vpop.f32.mrb[0].mxu0
  %v1651 = vpop.f32.mrb[0].mxu0
  %v1652 = vpop.f32.mrb[0].mxu0
  %1653 = vdwg.mxu0
  %1654 = vst [vmem:[%s7] sm:$0xff] %v1649
  // Predicated region
  $region30: #{custom_classifier_forward.1} parent=0 // pred_check
    _
  $region31: #{custom_classifier_forward.1} parent=0 // pred_check_branch
    %1656 = sbr.rel (0) target = $region33
  $region32: #{custom_classifier_forward.1} parent=0 // pred_region
    _
  $region33: #{custom_classifier_forward.1} parent=0 // pred_fallthru
    _
  // Predicated region
  $region34: #{custom_classifier_forward.1} parent=0 // pred_check
    _
  $region35: #{custom_classifier_forward.1} parent=0 // pred_check_branch
    %1658 = sbr.rel (0) target = $region37
  $region36: #{custom_classifier_forward.1} parent=0 // pred_region
    _
  $region37: #{custom_classifier_forward.1} parent=0 // pred_fallthru
    _

</llo_original>
